<compile_context>
chip_gen: v5e
topology: v5e:2x2
jax: 0.10.0
libtpu: 0.0.40
codegen_flags: <defaults>
</compile_context>

<pallas_src>
import jax
import jax.numpy as jnp
from jax.experimental import pallas as pl
from jax.experimental.pallas import tpu as pltpu


def _round_up(n: int, m: int) -> int:
    return ((n + m - 1) // m) * m


def _block_diag(w, p):
    """Block-diagonal stack of p copies of w: (fin, fout) -> (p*fin, p*fout)."""
    fin, fout = w.shape
    eye = jnp.eye(p, dtype=w.dtype)
    # out[i*fin+a, j*fout+b] = delta_ij * w[a, b]
    return (eye[:, None, :, None] * w[None, :, None, :]).reshape(p * fin, p * fout)


def _mlp_embedding_kernel(x_ref, w1_ref, b1_ref, w2_ref, b2_ref, o_ref):
    # x_ref: (TILE_M, P*F) original dtype; w1: (P*F, P*H) compute dtype;
    # b1: (1, P*H) f32; w2: (P*H, P*O) compute dtype; b2: (1, P*O) f32;
    # o_ref: (TILE_M, P*O) out dtype.
    x = x_ref[...].astype(w1_ref.dtype)  # in-kernel cast: no extra HBM pass

    # Layer 1: MXU matmul with f32 accumulation; bias + LeakyReLU in f32.
    h = jnp.dot(x, w1_ref[...], preferred_element_type=jnp.float32) + b1_ref[...]
    h = jnp.maximum(h, 0.2 * h)  # LeakyReLU(0.2)

    # Layer 2: back to the compute dtype for the MXU; accumulate in f32.
    h = h.astype(w2_ref.dtype)
    y = jnp.dot(h, w2_ref[...], preferred_element_type=jnp.float32) + b2_ref[...]
    y = jnp.maximum(y, 0.2 * y)  # LeakyReLU(0.2)

    o_ref[...] = y.astype(o_ref.dtype)


def _default_pack():
    """K-depth row packing: 8 on v5e (128-deep MXU), 16 elsewhere (256-deep)."""
    try:
        kind = jax.devices()[0].device_kind.lower()
        if "v5 lite" in kind or "v5e" in kind or "v5lite" in kind:
            return 8
    except Exception:
        pass
    return 16


def mlp_embedding(x, w1, b1, w2, b2, *,
                  compute_dtype=None, out_dtype=None,
                  pack=None, tile_m_max=2048):
    """x: (C, batch, features) -> (batch, C, out_size), matching MlpEmbedding.

    compute_dtype: matmul operand dtype (default float32 = exact parity with
                   the PyTorch module; pass jnp.bfloat16 to opt into bf16 MXU).
    out_dtype:     output dtype (default: x.dtype).
    pack:          logical rows packed per MXU row (default: 16, 8 on v5e).
    tile_m_max:    max packed rows per grid step.
    """
    C, B, F = x.shape
    H = w1.shape[1]
    O = w2.shape[1]
    assert w1.shape == (F, H) and b1.shape == (1, H)
    assert w2.shape == (H, O) and b2.shape == (1, O)

    if compute_dtype is None:
        compute_dtype = jnp.float32          # exact-parity default
    if out_dtype is None:
        out_dtype = x.dtype
    if pack is None:
        pack = _default_pack()

    N = C * B
    # torch: x.reshape(batch*C, features) -- plain row-major flatten of (C,B,F).
    x_flat = x.reshape(N, F)

    # Pick the packing factor P: prefer a power-of-two divisor of N so the
    # repack (N,F)->(N/P, P*F) is a free row-major view (no pad copy).
    P = None
    for cand in (pack, pack // 2, pack // 4):
        if cand >= 4 and N % cand == 0:
            P = cand
            break
    if P is None:
        P = max(pack, 1)                      # ragged N: one small pad copy
    Np = _round_up(N, P)
    if Np != N:
        x_flat = jnp.pad(x_flat, ((0, Np - N), (0, 0)))
    M = Np // P
    x_packed = x_flat.reshape(M, P * F)       # free row-major view

    # Block-diagonal packed weights (tiny; built once per trace) + tiled biases.
    w1p = _block_diag(w1.astype(compute_dtype), P)       # (P*F, P*H)
    w2p = _block_diag(w2.astype(compute_dtype), P)       # (P*H, P*O)
    b1p = jnp.tile(b1.astype(jnp.float32), (1, P))       # (1, P*H)
    b2p = jnp.tile(b2.astype(jnp.float32), (1, P))       # (1, P*O)

    # Row tile over packed rows. Block row-count must be a multiple of 8 or
    # equal M.  If everything would fit in one tile, still split into >=2 grid
    # steps so v7x megacore ("parallel") can use both TensorCores.
    if M <= 8:
        tile_m = M
    else:
        tile_m = min(tile_m_max, M)
        if tile_m == M:
            tile_m = _round_up(pl.cdiv(M, 2), 8)
        else:
            tile_m = max(8, (tile_m // 8) * 8)
    grid_m = pl.cdiv(M, tile_m)               # ragged last tile -> edge masking

    out_packed = pl.pallas_call(
        _mlp_embedding_kernel,
        out_shape=jax.ShapeDtypeStruct((M, P * O), out_dtype),
        grid_spec=pltpu.PrefetchScalarGridSpec(
            num_scalar_prefetch=0,
            grid=(grid_m,),
            in_specs=[
                # x: tiled over packed rows -> double-buffered by Pallas.
                pl.BlockSpec((tile_m, P * F), lambda i: (i, 0)),
                # Weights/biases: constant block index -> DMA'd once,
                # VMEM-resident across all grid steps.
                pl.BlockSpec((P * F, P * H), lambda i: (0, 0)),
                pl.BlockSpec((1, P * H), lambda i: (0, 0)),
                pl.BlockSpec((P * H, P * O), lambda i: (0, 0)),
                pl.BlockSpec((1, P * O), lambda i: (0, 0)),
            ],
            out_specs=pl.BlockSpec((tile_m, P * O), lambda i: (i, 0)),
        ),
        compiler_params=pltpu.CompilerParams(
            # Row tiles are independent -> shard across both TCs on v7x.
            dimension_semantics=("parallel",),
        ),
    )(x_packed, w1p, b1p, w2p, b2p)

    # Unpack: (M, P*O) -> (Np, O) is a free row-major view; drop pad rows.
    out_flat = out_packed.reshape(Np, O)[:N]
    # torch: x.reshape(batch_size, C_size, out_size) -- reinterprets row order.
    return out_flat.reshape(B, C, O)


def init_params(key, input_size, output_size, hidden_dim=32):
    """Synthetic init mirroring nn.Linear shapes (weights stored as (in, out))."""
    k1, k2, k3, k4 = jax.random.split(key, 4)
    bound1 = 1.0 / jnp.sqrt(input_size)
    bound2 = 1.0 / jnp.sqrt(hidden_dim)
    w1 = jax.random.uniform(k1, (input_size, hidden_dim), jnp.float32, -bound1, bound1)
    b1 = jax.random.uniform(k2, (1, hidden_dim), jnp.float32, -bound1, bound1)
    w2 = jax.random.uniform(k3, (hidden_dim, output_size), jnp.float32, -bound2, bound2)
    b2 = jax.random.uniform(k4, (1, output_size), jnp.float32, -bound2, bound2)
    return w1, b1, w2, b2


def _reference(x, w1, b1, w2, b2):
    def leaky(v):
        return jnp.where(v > 0, v, 0.2 * v)

    C, B, F = x.shape
    O = w2.shape[1]
    xf = x.reshape(C * B, F)
    return leaky(leaky(xf @ w1 + b1) @ w2 + b2).reshape(B, C, O)


if __name__ == "__main__":
    # Small shapes consistent with the forward: x is (C, batch, features).
    C, B, F = 4, 2, 16
    hidden_dim = 32
    out_size = 8

    key = jax.random.PRNGKey(0)
    kx, kp = jax.random.split(key)
    x = jax.random.normal(kx, (C, B, F), jnp.float32)
    w1, b1, w2, b2 = init_params(kp, F, out_size, hidden_dim)
    ref = _reference(x, w1, b1, w2, b2)

    # 1) Default exact-parity path (f32 compute) -- tight tolerance.
    y = jax.block_until_ready(mlp_embedding(x, w1, b1, w2, b2))
    assert y.shape == (B, C, out_size)
    assert jnp.allclose(y, ref, atol=1e-5, rtol=1e-5), "f32 path mismatch"

    # 2) Opt-in bf16 operand path (f32 accumulation) -- loose tolerance.
    y_bf = jax.block_until_ready(
        mlp_embedding(x, w1, b1, w2, b2, compute_dtype=jnp.bfloat16))
    assert jnp.allclose(y_bf, ref, atol=2e-2, rtol=2e-2), "bf16 path mismatch"

    # 3) Multi-step grid + ragged last row-tile (N=200, pack=8 -> M=25,
    #    tile_m=8 -> grid of 4 with a 1-row partial final block).
    C3, B3 = 4, 50
    x3 = jax.random.normal(jax.random.PRNGKey(1), (C3, B3, F), jnp.float32)
    ref3 = _reference(x3, w1, b1, w2, b2)
    y3 = jax.block_until_ready(
        mlp_embedding(x3, w1, b1, w2, b2, pack=8, tile_m_max=8))
    assert y3.shape == (B3, C3, out_size)
    assert jnp.allclose(y3, ref3, atol=1e-5, rtol=1e-5), "ragged grid mismatch"

    # 3b) Same data, default tiling: exercises the >=2-step megacore split.
    y3b = jax.block_until_ready(mlp_embedding(x3, w1, b1, w2, b2))
    assert jnp.allclose(y3b, ref3, atol=1e-5, rtol=1e-5), "megacore split mismatch"

    # 4) N with no power-of-two divisor (N=21) -> pad-to-multiple-of-P path.
    C4, B4 = 3, 7
    x4 = jax.random.normal(jax.random.PRNGKey(2), (C4, B4, F), jnp.float32)
    ref4 = _reference(x4, w1, b1, w2, b2)
    y4 = jax.block_until_ready(mlp_embedding(x4, w1, b1, w2, b2, pack=16))
    assert y4.shape == (B4, C4, out_size)
    assert jnp.allclose(y4, ref4, atol=1e-5, rtol=1e-5), "padded pack mismatch"

    print("KERNEL_OK")
</pallas_src>

<mosaic_0001>
module attributes {stable_mosaic.version = 11 : i64} {
  func.func @_mlp_embedding_kernel(%arg0: i32, %arg1: memref<1x128xf32, #tpu.memory_space<vmem>>, %arg2: memref<128x256xf32, #tpu.memory_space<vmem>>, %arg3: memref<1x256xf32, #tpu.memory_space<vmem>>, %arg4: memref<256x64xf32, #tpu.memory_space<vmem>>, %arg5: memref<1x64xf32, #tpu.memory_space<vmem>>, %arg6: memref<1x64xf32, #tpu.memory_space<vmem>>) attributes {dimension_semantics = [#tpu.dimension_semantics<parallel>], iteration_bounds = array<i64: 1>, scalar_prefetch = 0 : i64, scratch_operands = 0 : i64, tpu.core_type = #tpu.core_type<tc>, window_params = [{transform_indices = @transform_0, window_bounds = array<i64: 1, 128>}, {pipeline_mode = #tpu.pipeline_mode<synchronous>, transform_indices = @transform_1, window_bounds = array<i64: 128, 256>}, {pipeline_mode = #tpu.pipeline_mode<synchronous>, transform_indices = @transform_2, window_bounds = array<i64: 1, 256>}, {pipeline_mode = #tpu.pipeline_mode<synchronous>, transform_indices = @transform_3, window_bounds = array<i64: 256, 64>}, {pipeline_mode = #tpu.pipeline_mode<synchronous>, transform_indices = @transform_4, window_bounds = array<i64: 1, 64>}, {transform_indices = @transform_5, window_bounds = array<i64: 1, 64>}]} {
    %c0 = arith.constant 0 : index
    %c0_0 = arith.constant 0 : index
    %0 = vector.load %arg1[%c0, %c0_0] : memref<1x128xf32, #tpu.memory_space<vmem>>, vector<1x128xf32>
    %c0_1 = arith.constant 0 : index
    %c0_2 = arith.constant 0 : index
    %1 = vector.load %arg2[%c0_1, %c0_2] : memref<128x256xf32, #tpu.memory_space<vmem>>, vector<128x256xf32>
    %cst = arith.constant dense<0.000000e+00> : vector<1x256xf32>
    %2 = tpu.matmul %0, %1, %cst {dimension_numbers = #tpu.dot_dimension_numbers<[1], [0], [0], [1], [0, 0, 1, 1], [], []>} : vector<1x128xf32>, vector<128x256xf32>, vector<1x256xf32> -> vector<1x256xf32>
    %c0_3 = arith.constant 0 : index
    %c0_4 = arith.constant 0 : index
    %3 = vector.load %arg3[%c0_3, %c0_4] : memref<1x256xf32, #tpu.memory_space<vmem>>, vector<1x256xf32>
    %4 = arith.addf %2, %3 : vector<1x256xf32>
    %cst_5 = arith.constant 2.000000e-01 : f32
    %5 = vector.broadcast %cst_5 : f32 to vector<1x256xf32>
    %6 = arith.mulf %5, %4 : vector<1x256xf32>
    %7 = arith.maximumf %4, %6 : vector<1x256xf32>
    %c0_6 = arith.constant 0 : index
    %c0_7 = arith.constant 0 : index
    %8 = vector.load %arg4[%c0_6, %c0_7] : memref<256x64xf32, #tpu.memory_space<vmem>>, vector<256x64xf32>
    %cst_8 = arith.constant dense<0.000000e+00> : vector<1x64xf32>
    %9 = tpu.matmul %7, %8, %cst_8 {dimension_numbers = #tpu.dot_dimension_numbers<[1], [0], [0], [1], [0, 0, 1, 1], [], []>} : vector<1x256xf32>, vector<256x64xf32>, vector<1x64xf32> -> vector<1x64xf32>
    %c0_9 = arith.constant 0 : index
    %c0_10 = arith.constant 0 : index
    %10 = vector.load %arg5[%c0_9, %c0_10] : memref<1x64xf32, #tpu.memory_space<vmem>>, vector<1x64xf32>
    %11 = arith.addf %9, %10 : vector<1x64xf32>
    %cst_11 = arith.constant 2.000000e-01 : f32
    %12 = vector.broadcast %cst_11 : f32 to vector<1x64xf32>
    %13 = arith.mulf %12, %11 : vector<1x64xf32>
    %14 = arith.maximumf %11, %13 : vector<1x64xf32>
    %c0_12 = arith.constant 0 : index
    %c0_13 = arith.constant 0 : index
    %15 = vector.load %arg6[%c0_12, %c0_13] : memref<1x64xf32, #tpu.memory_space<vmem>>, vector<1x64xf32>
    tpu.vector_store %arg6[%c0_12, %c0_13], %14 {strides = array<i32>} : memref<1x64xf32, #tpu.memory_space<vmem>>, vector<1x64xf32>,
    return
  }
  func.func @transform_0(%arg0: i32) -> (i32, i32) {
    %c0_i32 = arith.constant 0 : i32
    %c0_i32_0 = arith.constant 0 : i32
    return %arg0, %c0_i32 : i32, i32
  }
  func.func @transform_1(%arg0: i32) -> (i32, i32) {
    %c0_i32 = arith.constant 0 : i32
    %c0_i32_0 = arith.constant 0 : i32
    %c0_i32_1 = arith.constant 0 : i32
    return %c0_i32, %c0_i32_0 : i32, i32
  }
  func.func @transform_2(%arg0: i32) -> (i32, i32) {
    %c0_i32 = arith.constant 0 : i32
    %c0_i32_0 = arith.constant 0 : i32
    %c0_i32_1 = arith.constant 0 : i32
    return %c0_i32, %c0_i32_0 : i32, i32
  }
  func.func @transform_3(%arg0: i32) -> (i32, i32) {
    %c0_i32 = arith.constant 0 : i32
    %c0_i32_0 = arith.constant 0 : i32
    %c0_i32_1 = arith.constant 0 : i32
    return %c0_i32, %c0_i32_0 : i32, i32
  }
  func.func @transform_4(%arg0: i32) -> (i32, i32) {
    %c0_i32 = arith.constant 0 : i32
    %c0_i32_0 = arith.constant 0 : i32
    %c0_i32_1 = arith.constant 0 : i32
    return %c0_i32, %c0_i32_0 : i32, i32
  }
  func.func @transform_5(%arg0: i32) -> (i32, i32) {
    %c0_i32 = arith.constant 0 : i32
    %c0_i32_0 = arith.constant 0 : i32
    return %arg0, %c0_i32 : i32, i32
  }
}

</mosaic_0001>

<llo_original>
// kernel: tpu_custom_call.1
$region0: #{tpu_custom_call.1}
  #allocation0 [shape = 'u32[]', space=smem, size = 0x4, offset = 0x4, fixed_abs, tag = 'smem constant byte address 0x4 - core index']
  #allocation1 [shape = 'u32[72,128]{1,0:T(1,128)}', space=vmem, size = 0x9000, scoped, tag = 'internal scratch']
  %s0 = inlined_call_operand.vmem [shape: f32[1,128], index: 0, kind: input, shape index: {}]
  %s1 = inlined_call_operand.vmem [shape: f32[128,256], index: 1, kind: input, shape index: {}]
  %s2 = inlined_call_operand.vmem [shape: f32[1,256], index: 2, kind: input, shape index: {}]
  %s3 = inlined_call_operand.vmem [shape: f32[256,64], index: 3, kind: input, shape index: {}]
  %s4 = inlined_call_operand.vmem [shape: f32[1,64], index: 4, kind: input, shape index: {}]
  %s5 = inlined_call_operand.hbm [shape: f32[1,64], index: 5, kind: output, shape index: {}]
  %s6 = sld [smem:[#allocation0]]
  $region30: #{tpu_custom_call.1} parent=0
    _
  %s8 = ssub.s32 1, %s6
  %s9 = scalar_select 0, %s8, %s6
  $region1: #{tpu_custom_call.1} parent=0
    #allocation2 [shape = 'u8[512]{0}', space=vmem, size = 0x400, scoped, tag = 'output window, operand 0, single buffered']
    #allocation3 [shape = 's32[1]{0}', space=sflag, size = 0x4, scoped, tag = 'scoped memory for tpu_custom_call.1']
    %10 = vsyncpa [#allocation3], 0
    // Predicated region
    $region2: #{tpu_custom_call.1} parent=1 // pred_check
      _
    $region3: #{tpu_custom_call.1} parent=1 // pred_check_branch
      %12 = sbr.rel (0) target = $region5
    $region4: #{tpu_custom_call.1} parent=1 // pred_region
      _
    $region5: #{tpu_custom_call.1} parent=1 // pred_fallthru
      _
    // Predicated region
    $region6: #{tpu_custom_call.1} parent=1 // pred_check
      _
    $region7: #{tpu_custom_call.1} parent=1 // pred_check_branch
      %14 = sbr.rel (0) target = $region9
    $region8: #{tpu_custom_call.1} parent=1 // pred_region
      _
    $region9: #{tpu_custom_call.1} parent=1 // pred_fallthru
      _
    // Predicated region
    $region10: #{tpu_custom_call.1} parent=1 // pred_check
      _
    $region11: #{tpu_custom_call.1} parent=1 // pred_check_branch
      %16 = sbr.rel (0) target = $region13
    $region12: #{tpu_custom_call.1} parent=1 // pred_region
      _
    $region13: #{tpu_custom_call.1} parent=1 // pred_fallthru
      _
    // Predicated region
    $region14: #{tpu_custom_call.1} parent=1 // pred_check
      _
    $region15: #{tpu_custom_call.1} parent=1 // pred_check_branch
      %18 = sbr.rel (0) target = $region17
    $region16: #{tpu_custom_call.1} parent=1 // pred_region
      _
    $region17: #{tpu_custom_call.1} parent=1 // pred_fallthru
      _
    // Predicated region
    $region18: #{tpu_custom_call.1} parent=1 // pred_check
      _
    $region19: #{tpu_custom_call.1} parent=1 // pred_check_branch
      %20 = sbr.rel (0) target = $region21
    $region20: #{tpu_custom_call.1} parent=1 // pred_region
      _
    $region21: #{tpu_custom_call.1} parent=1 // pred_fallthru
      _
    %v21 = vld [vmem:[%s0] sm:$0x1]
    %v22 = vld [vmem:[%s1] sm:$0xff]
    %v23 = vld [vmem:[%s1 + $0x8] sm:$0xff]
    %v24 = vld [vmem:[%s1 + $0x10] sm:$0xff]
    %v25 = vld [vmem:[%s1 + $0x18] sm:$0xff]
    %v26 = vld [vmem:[%s1 + $0x20] sm:$0xff]
    %v27 = vld [vmem:[%s1 + $0x28] sm:$0xff]
    %v28 = vld [vmem:[%s1 + $0x30] sm:$0xff]
    %v29 = vld [vmem:[%s1 + $0x38] sm:$0xff]
    %v30 = vld [vmem:[%s1 + $0x40] sm:$0xff]
    %v31 = vld [vmem:[%s1 + $0x48] sm:$0xff]
    %v32 = vld [vmem:[%s1 + $0x50] sm:$0xff]
    %v33 = vld [vmem:[%s1 + $0x58] sm:$0xff]
    %v34 = vld [vmem:[%s1 + $0x60] sm:$0xff]
    %v35 = vld [vmem:[%s1 + $0x68] sm:$0xff]
    %v36 = vld [vmem:[%s1 + $0x70] sm:$0xff]
    %v37 = vld [vmem:[%s1 + $0x78] sm:$0xff]
    %v38 = vld [vmem:[%s1 + $0x80] sm:$0xff]
    %v39 = vld [vmem:[%s1 + $0x88] sm:$0xff]
    %v40 = vld [vmem:[%s1 + $0x90] sm:$0xff]
    %v41 = vld [vmem:[%s1 + $0x98] sm:$0xff]
    %v42 = vld [vmem:[%s1 + $0xa0] sm:$0xff]
    %v43 = vld [vmem:[%s1 + $0xa8] sm:$0xff]
    %v44 = vld [vmem:[%s1 + $0xb0] sm:$0xff]
    %v45 = vld [vmem:[%s1 + $0xb8] sm:$0xff]
    %v46 = vld [vmem:[%s1 + $0xc0] sm:$0xff]
    %v47 = vld [vmem:[%s1 + $0xc8] sm:$0xff]
    %v48 = vld [vmem:[%s1 + $0xd0] sm:$0xff]
    %v49 = vld [vmem:[%s1 + $0xd8] sm:$0xff]
    %v50 = vld [vmem:[%s1 + $0xe0] sm:$0xff]
    %v51 = vld [vmem:[%s1 + $0xe8] sm:$0xff]
    %v52 = vld [vmem:[%s1 + $0xf0] sm:$0xff]
    %v53 = vld [vmem:[%s1 + $0xf8] sm:$0xff]
    %v54 = vld [vmem:[%s2] sm:$0x3]
    %v56 = vperm.slane %v54, 0
    %v57 = vperm.slane %v54, 1
    %60 = vmatpush.msra.mxu0 %v52
    %61 = vmatpush.msra.mxu0 %v50
    %62 = vmatpush.msra.mxu0 %v48
    %63 = vmatpush.msra.mxu0 %v46
    %64 = vmatpush.msra.mxu0 %v44
    %65 = vmatpush.msra.mxu0 %v42
    %66 = vmatpush.msra.mxu0 %v40
    %67 = vmatpush.msra.mxu0 %v38
    %68 = vmatpush.msra.mxu0 %v36
    %69 = vmatpush.msra.mxu0 %v34
    %70 = vmatpush.msra.mxu0 %v32
    %71 = vmatpush.msra.mxu0 %v30
    %72 = vmatpush.msra.mxu0 %v28
    %73 = vmatpush.msra.mxu0 %v26
    %74 = vmatpush.msra.mxu0 %v24
    %75 = vmatpush.msra.mxu0 %v22
    %76 = vmatmul.f32.gmra.mxu0 %v21
    %v77 = vpop.f32.mrf.mxu0
    %v78 = vadd.f32 %v56, %v77
    %79 = vdwg.mxu0
    %80 = vmatpush.msra.mxu0 %v53
    %81 = vmatpush.msra.mxu0 %v51
    %82 = vmatpush.msra.mxu0 %v49
    %83 = vmatpush.msra.mxu0 %v47
    %84 = vmatpush.msra.mxu0 %v45
    %85 = vmatpush.msra.mxu0 %v43
    %86 = vmatpush.msra.mxu0 %v41
    %87 = vmatpush.msra.mxu0 %v39
    %88 = vmatpush.msra.mxu0 %v37
    %89 = vmatpush.msra.mxu0 %v35
    %90 = vmatpush.msra.mxu0 %v33
    %91 = vmatpush.msra.mxu0 %v31
    %92 = vmatpush.msra.mxu0 %v29
    %93 = vmatpush.msra.mxu0 %v27
    %94 = vmatpush.msra.mxu0 %v25
    %95 = vmatpush.msra.mxu0 %v23
    %96 = vmatmul.f32.gmra.mxu0 %v21
    %v97 = vpop.f32.mrf.mxu0
    %v98 = vadd.f32 %v57, %v97
    %99 = vdwg.mxu0
    %v100 = vmul.f32 %v78, 0.2
    %v101 = vmul.f32 %v98, 0.2
    %v102 = vmax.f32 %v78, %v100
    %v103 = vmax.f32 %v98, %v101
    %v104 = vld [vmem:[%s3] sm:$0xff]
    %v105 = vld [vmem:[%s3 + $0x8] sm:$0xff]
    %v106 = vld [vmem:[%s3 + $0x10] sm:$0xff]
    %v107 = vld [vmem:[%s3 + $0x18] sm:$0xff]
    %v108 = vld [vmem:[%s3 + $0x20] sm:$0xff]
    %v109 = vld [vmem:[%s3 + $0x28] sm:$0xff]
    %v110 = vld [vmem:[%s3 + $0x30] sm:$0xff]
    %v111 = vld [vmem:[%s3 + $0x38] sm:$0xff]
    %v112 = vld [vmem:[%s3 + $0x40] sm:$0xff]
    %v113 = vld [vmem:[%s3 + $0x48] sm:$0xff]
    %v114 = vld [vmem:[%s3 + $0x50] sm:$0xff]
    %v115 = vld [vmem:[%s3 + $0x58] sm:$0xff]
    %v116 = vld [vmem:[%s3 + $0x60] sm:$0xff]
    %v117 = vld [vmem:[%s3 + $0x68] sm:$0xff]
    %v118 = vld [vmem:[%s3 + $0x70] sm:$0xff]
    %v119 = vld [vmem:[%s3 + $0x78] sm:$0xff]
    %v120 = vld [vmem:[%s3 + $0x80] sm:$0xff]
    %v121 = vld [vmem:[%s3 + $0x88] sm:$0xff]
    %v122 = vld [vmem:[%s3 + $0x90] sm:$0xff]
    %v123 = vld [vmem:[%s3 + $0x98] sm:$0xff]
    %v124 = vld [vmem:[%s3 + $0xa0] sm:$0xff]
    %v125 = vld [vmem:[%s3 + $0xa8] sm:$0xff]
    %v126 = vld [vmem:[%s3 + $0xb0] sm:$0xff]
    %v127 = vld [vmem:[%s3 + $0xb8] sm:$0xff]
    %v128 = vld [vmem:[%s3 + $0xc0] sm:$0xff]
    %v129 = vld [vmem:[%s3 + $0xc8] sm:$0xff]
    %v130 = vld [vmem:[%s3 + $0xd0] sm:$0xff]
    %v131 = vld [vmem:[%s3 + $0xd8] sm:$0xff]
    %v132 = vld [vmem:[%s3 + $0xe0] sm:$0xff]
    %v133 = vld [vmem:[%s3 + $0xe8] sm:$0xff]
    %v134 = vld [vmem:[%s3 + $0xf0] sm:$0xff]
    %v135 = vld [vmem:[%s3 + $0xf8] sm:$0xff]
    %v136 = vld [vmem:[%s4] sm:$0x1]
    %137 = vmatpush.msra.mxu0 %v119
    %138 = vmatpush.msra.mxu0 %v118
    %139 = vmatpush.msra.mxu0 %v117
    %140 = vmatpush.msra.mxu0 %v116
    %141 = vmatpush.msra.mxu0 %v115
    %142 = vmatpush.msra.mxu0 %v114
    %143 = vmatpush.msra.mxu0 %v113
    %144 = vmatpush.msra.mxu0 %v112
    %145 = vmatpush.msra.mxu0 %v111
    %146 = vmatpush.msra.mxu0 %v110
    %147 = vmatpush.msra.mxu0 %v109
    %148 = vmatpush.msra.mxu0 %v108
    %149 = vmatpush.msra.mxu0 %v107
    %150 = vmatpush.msra.mxu0 %v106
    %151 = vmatpush.msra.mxu0 %v105
    %152 = vmatpush.msra.mxu0 %v104
    %153 = vmatmul.f32.gmra.mxu0 %v102
    %v154 = vpop.f32.mrf.mxu0
    %v155 = vadd.f32 %v136, %v154
    %156 = vdwg.mxu0
    %157 = vmatpush.msra.mxu0 %v135
    %158 = vmatpush.msra.mxu0 %v134
    %159 = vmatpush.msra.mxu0 %v133
    %160 = vmatpush.msra.mxu0 %v132
    %161 = vmatpush.msra.mxu0 %v131
    %162 = vmatpush.msra.mxu0 %v130
    %163 = vmatpush.msra.mxu0 %v129
    %164 = vmatpush.msra.mxu0 %v128
    %165 = vmatpush.msra.mxu0 %v127
    %166 = vmatpush.msra.mxu0 %v126
    %167 = vmatpush.msra.mxu0 %v125
    %168 = vmatpush.msra.mxu0 %v124
    %169 = vmatpush.msra.mxu0 %v123
    %170 = vmatpush.msra.mxu0 %v122
    %171 = vmatpush.msra.mxu0 %v121
    %172 = vmatpush.msra.mxu0 %v120
    %173 = vmatmul.f32.gmra.mxu0 %v103
    %v174 = vpop.f32.mrf.mxu0
    %v175 = vadd.f32 %v155, %v174
    %176 = vdwg.mxu0
    %v177 = vmul.f32 %v175, 0.2
    %v178 = vmax.f32 %v175, %v177
    %vm179 = vcmask 516096
    %180 = vst.msk [vmem:[#allocation2] sm:$0x1] %vm179, %v178
    // Predicated region
    $region22: #{tpu_custom_call.1} parent=1 // pred_check
      _
    $region23: #{tpu_custom_call.1} parent=1 // pred_check_branch
      %182 = sbr.rel (0) target = $region25
    $region24: #{tpu_custom_call.1} parent=1 // pred_region
      %184 = vsyncadd [#allocation3], 0
      %s186 = sshll.u32 [#allocation2], 4
      %s187 = int_to_ptr.vmem [resolvable:$true] %s186
      %s188 = sshll.u32 %s5, 4
      %s189 = int_to_ptr.hbm [resolvable:$true] %s188
      %191 = dma.vmem_to_hbm [thread:$0]  %s187, 16, %s189, [#allocation3]
    $region25: #{tpu_custom_call.1} parent=1 // pred_fallthru
      _
    // Predicated region
    $region26: #{tpu_custom_call.1} parent=1 // pred_check
      _
    $region27: #{tpu_custom_call.1} parent=1 // pred_check_branch
      %193 = sbr.rel (0) target = $region29
    $region28: #{tpu_custom_call.1} parent=1 // pred_region
      %195 = dma.done [#allocation3], 16
    $region29: #{tpu_custom_call.1} parent=1 // pred_fallthru
      _
    %196 = vsyncpa [#allocation3], 1

</llo_original>
